<compile_context>
chip_gen: v5e
topology: v5e:2x2
jax: 0.10.0
libtpu: 0.0.40
codegen_flags: <defaults>
</compile_context>

<pallas_src>
import jax
import jax.numpy as jnp
import numpy as np
from jax.experimental import pallas as pl
from jax.experimental.pallas import tpu as pltpu


LANE = 128
TARGET_X_BLOCK_BYTES = 2 << 20   # ~2 MiB of x per grid step (in+out ~4 MiB)
MAX_T_TILE = 2048


def film_mod_kernel(gamma_ref, beta_ref, x_ref, o_ref):
    """One (row_tile, t_tile) FiLM tile: o = gamma * x + beta.

    gamma_ref, beta_ref : (row_tile, 1)       f32, broadcast over lanes
    x_ref, o_ref        : (row_tile, t_tile)  feature-map tile
    """
    g = gamma_ref[...]
    b = beta_ref[...]
    x = x_ref[...]
    o_ref[...] = (g * x + b).astype(o_ref.dtype)


def _choose_tiles(R, T, itemsize):
    """Pick (row_tile, t_tile) honoring the (8,128) / full-dim rule."""
    # Lane axis: multiple of 128, or the full (small) T.
    if T <= LANE:
        t_tile = T
    else:
        t_tile = min(MAX_T_TILE, (T // LANE) * LANE)
    # Sublane axis: multiple of the dtype granule, or the full R.
    granule = 8 if itemsize >= 4 else (16 if itemsize == 2 else 32)
    budget_rows = max(granule, TARGET_X_BLOCK_BYTES // (t_tile * itemsize))
    if R <= budget_rows or R <= granule:
        row_tile = R
    else:
        row_tile = (min(budget_rows, R) // granule) * granule
        row_tile = max(granule, row_tile)
    return row_tile, t_tile


def film_layer(x, condition, w, bias, n_channels):
    """FiLMLayer.forward.

    x         : (N, C, L)   feature map (PyTorch NCW layout)
    condition : (N, B, K)   conditioning; B = subblock_num, K = 32*subband_num
    w         : (2C, K)     film_gen weight (PyTorch nn.Linear layout)
    bias      : (2C,)       film_gen bias
    """
    N, C, L = x.shape
    B = condition.shape[1]
    assert C == n_channels

    # --- film_gen: tiny Linear, kept in XLA (out of the Pallas hot path) ----
    film = condition @ w.T + bias                 # (N, B, 2C)
    film = jnp.transpose(film, (0, 2, 1))         # 'n l c -> n c l' -> (N, 2C, B)
    gamma = film[:, :C, :].reshape(N * C * B, 1).astype(jnp.float32)
    beta = film[:, C:, :].reshape(N * C * B, 1).astype(jnp.float32)

    # --- module-mandated pad to a multiple of B, then 2-D contiguous view ---
    pad = (B - L % B) % B
    Lp = L + pad
    T = Lp // B
    R = N * C * B

    xp = jnp.pad(x, ((0, 0), (0, 0), (0, pad))) if pad > 0 else x
    xr = xp.reshape(R, T)                         # 'n c (b t) -> (n c b) t', contiguous

    # --- tiling: ragged edges handled by Pallas (no host pad / crop of T) ---
    itemsize = jnp.dtype(x.dtype).itemsize
    row_tile, t_tile = _choose_tiles(R, T, itemsize)
    grid = (pl.cdiv(R, row_tile), pl.cdiv(T, t_tile))

    cost = pl.CostEstimate(
        flops=2 * R * T,
        transcendentals=0,
        bytes_accessed=2 * R * T * itemsize + 2 * R * 4,
    )

    out = pl.pallas_call(
        film_mod_kernel,
        out_shape=jax.ShapeDtypeStruct((R, T), x.dtype),
        grid=grid,
        in_specs=[
            # gamma / beta: constant across the t axis -> stay resident in VMEM.
            pl.BlockSpec((row_tile, 1), lambda r, t: (r, 0)),
            pl.BlockSpec((row_tile, 1), lambda r, t: (r, 0)),
            # x: lane-dense streaming tiles.
            pl.BlockSpec((row_tile, t_tile), lambda r, t: (r, t)),
        ],
        out_specs=pl.BlockSpec((row_tile, t_tile), lambda r, t: (r, t)),
        compiler_params=pltpu.CompilerParams(
            dimension_semantics=("parallel", "parallel"),
            vmem_limit_bytes=32 * 1024 * 1024,
        ),
        cost_estimate=cost,
    )(gamma, beta, xr)

    y = out.reshape(N, C, Lp)                     # contiguous reshape back to NCW
    if pad > 0:
        y = y[:, :, :L]                           # module semantics: crop to L
    return y


def film_layer_ref(x, condition, w, bias, n_channels):
    """Pure-JAX reference mirroring the PyTorch forward."""
    N, C, L = x.shape
    B = condition.shape[1]
    pad = (B - L % B) % B
    xp = jnp.pad(x, ((0, 0), (0, 0), (0, pad))) if pad > 0 else x
    T = (L + pad) // B
    film = condition @ w.T + bias                 # (N, B, 2C)
    film = jnp.transpose(film, (0, 2, 1))         # (N, 2C, B)
    gamma = film[:, :n_channels, :][..., None]    # (N, C, B, 1)
    beta = film[:, n_channels:, :][..., None]     # (N, C, B, 1)
    xr = xp.reshape(N, C, B, T)
    y = (gamma * xr + beta).reshape(N, C, L + pad)
    return y[:, :, :L] if pad > 0 else y


if __name__ == "__main__":
    # module config (defaults of FiLMLayer)
    n_channels = 10
    subband_num = 3
    K = 32 * subband_num        # film_gen input features = 96
    out_feat = 2 * n_channels   # film_gen output features = 20

    key = jax.random.PRNGKey(0)
    kx, kc, kw, kb, kx2 = jax.random.split(key, 5)

    # deterministic film_gen params (PyTorch nn.Linear layout: weight (2C, K))
    bound = 1.0 / np.sqrt(K)
    w = jax.random.uniform(kw, (out_feat, K), jnp.float32, -bound, bound)
    bias = jax.random.uniform(kb, (out_feat,), jnp.float32, -bound, bound)

    # --- case 1: small shapes, T < 128, forces padding_size = 2 -------------
    N, B, L = 2, 4, 30
    x = jax.random.normal(kx, (N, n_channels, L), dtype=jnp.float32)
    condition = jax.random.normal(kc, (N, B, K), dtype=jnp.float32)

    y = jax.block_until_ready(film_layer(x, condition, w, bias, n_channels))
    y_ref = film_layer_ref(x, condition, w, bias, n_channels)
    assert y.shape == (N, n_channels, L)
    np.testing.assert_allclose(np.asarray(y), np.asarray(y_ref),
                               rtol=1e-5, atol=1e-5)

    # --- case 2: T > 128 and not a tile multiple (exercises ragged edge) ----
    L2 = 1202                    # pad = 2, T = 301 -> t_tile 256, ragged tile
    x2 = jax.random.normal(kx2, (N, n_channels, L2), dtype=jnp.float32)
    y2 = jax.block_until_ready(film_layer(x2, condition, w, bias, n_channels))
    y2_ref = film_layer_ref(x2, condition, w, bias, n_channels)
    np.testing.assert_allclose(np.asarray(y2), np.asarray(y2_ref),
                               rtol=1e-5, atol=1e-5)

    print("KERNEL_OK")
</pallas_src>

<mosaic_0001>
module attributes {stable_mosaic.version = 11 : i64} {
  func.func @film_mod_kernel(%arg0: i32, %arg1: i32, %arg2: memref<80x1xf32, #tpu.memory_space<vmem>>, %arg3: memref<80x1xf32, #tpu.memory_space<vmem>>, %arg4: memref<80x8xf32, #tpu.memory_space<vmem>>, %arg5: memref<80x8xf32, #tpu.memory_space<vmem>>) attributes {dimension_semantics = [#tpu.dimension_semantics<parallel>, #tpu.dimension_semantics<parallel>], iteration_bounds = array<i64: 1, 1>, scalar_prefetch = 0 : i64, scratch_operands = 0 : i64, tpu.core_type = #tpu.core_type<tc>, window_params = [{transform_indices = @transform_0, window_bounds = array<i64: 80, 1>}, {transform_indices = @transform_1, window_bounds = array<i64: 80, 1>}, {transform_indices = @transform_2, window_bounds = array<i64: 80, 8>}, {transform_indices = @transform_3, window_bounds = array<i64: 80, 8>}]} {
    %c0 = arith.constant 0 : index
    %c0_0 = arith.constant 0 : index
    %0 = vector.load %arg2[%c0, %c0_0] : memref<80x1xf32, #tpu.memory_space<vmem>>, vector<80x1xf32>
    %c0_1 = arith.constant 0 : index
    %c0_2 = arith.constant 0 : index
    %1 = vector.load %arg3[%c0_1, %c0_2] : memref<80x1xf32, #tpu.memory_space<vmem>>, vector<80x1xf32>
    %c0_3 = arith.constant 0 : index
    %c0_4 = arith.constant 0 : index
    %2 = vector.load %arg4[%c0_3, %c0_4] : memref<80x8xf32, #tpu.memory_space<vmem>>, vector<80x8xf32>
    %3 = vector.broadcast %0 : vector<80x1xf32> to vector<80x8xf32>
    %4 = arith.mulf %3, %2 : vector<80x8xf32>
    %5 = vector.broadcast %1 : vector<80x1xf32> to vector<80x8xf32>
    %6 = arith.addf %4, %5 : vector<80x8xf32>
    %c0_5 = arith.constant 0 : index
    %c0_6 = arith.constant 0 : index
    %7 = vector.load %arg5[%c0_5, %c0_6] : memref<80x8xf32, #tpu.memory_space<vmem>>, vector<80x8xf32>
    tpu.vector_store %arg5[%c0_5, %c0_6], %6 {strides = array<i32>} : memref<80x8xf32, #tpu.memory_space<vmem>>, vector<80x8xf32>,
    return
  }
  func.func @transform_0(%arg0: i32, %arg1: i32) -> (i32, i32) {
    %c0_i32 = arith.constant 0 : i32
    %c0_i32_0 = arith.constant 0 : i32
    return %arg0, %c0_i32 : i32, i32
  }
  func.func @transform_1(%arg0: i32, %arg1: i32) -> (i32, i32) {
    %c0_i32 = arith.constant 0 : i32
    %c0_i32_0 = arith.constant 0 : i32
    return %arg0, %c0_i32 : i32, i32
  }
  func.func @transform_2(%arg0: i32, %arg1: i32) -> (i32, i32) {
    %c0_i32 = arith.constant 0 : i32
    return %arg0, %arg1 : i32, i32
  }
  func.func @transform_3(%arg0: i32, %arg1: i32) -> (i32, i32) {
    %c0_i32 = arith.constant 0 : i32
    return %arg0, %arg1 : i32, i32
  }
}

</mosaic_0001>

<llo_original>
// kernel: tpu_custom_call.1
$region0: #{tpu_custom_call.1}
  #allocation0 [shape = 'u32[]', space=smem, size = 0x4, offset = 0x4, fixed_abs, tag = 'smem constant byte address 0x4 - core index']
  #allocation1 [shape = 'u32[72,128]{1,0:T(1,128)}', space=vmem, size = 0x9000, scoped, tag = 'internal scratch']
  %s0 = inlined_call_operand.vmem [shape: f32[80,1], index: 0, kind: input, shape index: {}]
  %s1 = inlined_call_operand.vmem [shape: f32[80,1], index: 1, kind: input, shape index: {}]
  %s2 = inlined_call_operand.vmem [shape: f32[80,8], index: 2, kind: input, shape index: {}]
  %s3 = inlined_call_operand.vmem [shape: f32[80,8], index: 3, kind: output, shape index: {}]
  %s4 = sld [smem:[#allocation0]]
  $region22: #{tpu_custom_call.1} parent=0
    _
  %s6 = ssub.s32 1, %s4
  %s7 = scalar_select 0, %s6, %s4
  // Predicated region
  $region2: #{tpu_custom_call.1} parent=0 // pred_check
    _
  $region3: #{tpu_custom_call.1} parent=0 // pred_check_branch
    %9 = sbr.rel (0) target = $region5
  $region4: #{tpu_custom_call.1} parent=0 // pred_region
    _
  $region5: #{tpu_custom_call.1} parent=0 // pred_fallthru
    _
  // Predicated region
  $region6: #{tpu_custom_call.1} parent=0 // pred_check
    _
  $region7: #{tpu_custom_call.1} parent=0 // pred_check_branch
    %11 = sbr.rel (0) target = $region9
  $region8: #{tpu_custom_call.1} parent=0 // pred_region
    _
  $region9: #{tpu_custom_call.1} parent=0 // pred_fallthru
    _
  // Predicated region
  $region10: #{tpu_custom_call.1} parent=0 // pred_check
    _
  $region11: #{tpu_custom_call.1} parent=0 // pred_check_branch
    %13 = sbr.rel (0) target = $region13
  $region12: #{tpu_custom_call.1} parent=0 // pred_region
    _
  $region13: #{tpu_custom_call.1} parent=0 // pred_fallthru
    _
  %v14 = vld [vmem:[%s0] sm:$0xff]
  %v15 = vld [vmem:[%s0 + $0x8] sm:$0xff]
  %v16 = vld [vmem:[%s0 + $0x10] sm:$0xff]
  %v17 = vld [vmem:[%s0 + $0x18] sm:$0xff]
  %v18 = vld [vmem:[%s0 + $0x20] sm:$0xff]
  %v19 = vld [vmem:[%s0 + $0x28] sm:$0xff]
  %v20 = vld [vmem:[%s0 + $0x30] sm:$0xff]
  %v21 = vld [vmem:[%s0 + $0x38] sm:$0xff]
  %v22 = vld [vmem:[%s0 + $0x40] sm:$0xff]
  %v23 = vld [vmem:[%s0 + $0x48] sm:$0xff]
  %v24 = vld [vmem:[%s1] sm:$0xff]
  %v25 = vld [vmem:[%s1 + $0x8] sm:$0xff]
  %v26 = vld [vmem:[%s1 + $0x10] sm:$0xff]
  %v27 = vld [vmem:[%s1 + $0x18] sm:$0xff]
  %v28 = vld [vmem:[%s1 + $0x20] sm:$0xff]
  %v29 = vld [vmem:[%s1 + $0x28] sm:$0xff]
  %v30 = vld [vmem:[%s1 + $0x30] sm:$0xff]
  %v31 = vld [vmem:[%s1 + $0x38] sm:$0xff]
  %v32 = vld [vmem:[%s1 + $0x40] sm:$0xff]
  %v33 = vld [vmem:[%s1 + $0x48] sm:$0xff]
  %v34 = vld [vmem:[%s2] sm:$0xff]
  %v35 = vld [vmem:[%s2 + $0x8] sm:$0xff]
  %v36 = vld [vmem:[%s2 + $0x10] sm:$0xff]
  %v37 = vld [vmem:[%s2 + $0x18] sm:$0xff]
  %v38 = vld [vmem:[%s2 + $0x20] sm:$0xff]
  %v39 = vld [vmem:[%s2 + $0x28] sm:$0xff]
  %v40 = vld [vmem:[%s2 + $0x30] sm:$0xff]
  %v41 = vld [vmem:[%s2 + $0x38] sm:$0xff]
  %v42 = vld [vmem:[%s2 + $0x40] sm:$0xff]
  %v43 = vld [vmem:[%s2 + $0x48] sm:$0xff]
  %45 = vset.pattern.permute.xlu0 0
  %46 = vperm.xlu0 %45, %v14
  %v47 = vpop.permute.xlu0 %46
  %50 = vset.pattern.permute.xlu0 0
  %51 = vperm.xlu0 %50, %v15
  %v52 = vpop.permute.xlu0 %51
  %55 = vset.pattern.permute.xlu0 0
  %56 = vperm.xlu0 %55, %v16
  %v57 = vpop.permute.xlu0 %56
  %60 = vset.pattern.permute.xlu0 0
  %61 = vperm.xlu0 %60, %v17
  %v62 = vpop.permute.xlu0 %61
  %65 = vset.pattern.permute.xlu0 0
  %66 = vperm.xlu0 %65, %v18
  %v67 = vpop.permute.xlu0 %66
  %70 = vset.pattern.permute.xlu0 0
  %71 = vperm.xlu0 %70, %v19
  %v72 = vpop.permute.xlu0 %71
  %75 = vset.pattern.permute.xlu0 0
  %76 = vperm.xlu0 %75, %v20
  %v77 = vpop.permute.xlu0 %76
  %80 = vset.pattern.permute.xlu0 0
  %81 = vperm.xlu0 %80, %v21
  %v82 = vpop.permute.xlu0 %81
  %85 = vset.pattern.permute.xlu0 0
  %86 = vperm.xlu0 %85, %v22
  %v87 = vpop.permute.xlu0 %86
  %90 = vset.pattern.permute.xlu0 0
  %91 = vperm.xlu0 %90, %v23
  %v92 = vpop.permute.xlu0 %91
  %v94 = vmul.f32 %v47, %v34
  %v95 = vmul.f32 %v52, %v35
  %v96 = vmul.f32 %v57, %v36
  %v97 = vmul.f32 %v62, %v37
  %v98 = vmul.f32 %v67, %v38
  %v99 = vmul.f32 %v72, %v39
  %v100 = vmul.f32 %v77, %v40
  %v101 = vmul.f32 %v82, %v41
  %v102 = vmul.f32 %v87, %v42
  %v103 = vmul.f32 %v92, %v43
  %105 = vset.pattern.permute.xlu0 0
  %106 = vperm.xlu0 %105, %v24
  %v107 = vpop.permute.xlu0 %106
  %110 = vset.pattern.permute.xlu0 0
  %111 = vperm.xlu0 %110, %v25
  %v112 = vpop.permute.xlu0 %111
  %115 = vset.pattern.permute.xlu0 0
  %116 = vperm.xlu0 %115, %v26
  %v117 = vpop.permute.xlu0 %116
  %120 = vset.pattern.permute.xlu0 0
  %121 = vperm.xlu0 %120, %v27
  %v122 = vpop.permute.xlu0 %121
  %125 = vset.pattern.permute.xlu0 0
  %126 = vperm.xlu0 %125, %v28
  %v127 = vpop.permute.xlu0 %126
  %130 = vset.pattern.permute.xlu0 0
  %131 = vperm.xlu0 %130, %v29
  %v132 = vpop.permute.xlu0 %131
  %135 = vset.pattern.permute.xlu0 0
  %136 = vperm.xlu0 %135, %v30
  %v137 = vpop.permute.xlu0 %136
  %140 = vset.pattern.permute.xlu0 0
  %141 = vperm.xlu0 %140, %v31
  %v142 = vpop.permute.xlu0 %141
  %145 = vset.pattern.permute.xlu0 0
  %146 = vperm.xlu0 %145, %v32
  %v147 = vpop.permute.xlu0 %146
  %150 = vset.pattern.permute.xlu0 0
  %151 = vperm.xlu0 %150, %v33
  %v152 = vpop.permute.xlu0 %151
  %v154 = vadd.f32 %v94, %v107
  %v155 = vadd.f32 %v95, %v112
  %v156 = vadd.f32 %v96, %v117
  %v157 = vadd.f32 %v97, %v122
  %v158 = vadd.f32 %v98, %v127
  %v159 = vadd.f32 %v99, %v132
  %v160 = vadd.f32 %v100, %v137
  %v161 = vadd.f32 %v101, %v142
  %v162 = vadd.f32 %v102, %v147
  %v163 = vadd.f32 %v103, %v152
  %vm164 = vcmask 64512
  %165 = vst.msk [vmem:[%s3] sm:$0xff] %vm164, %v154
  %166 = vst.msk [vmem:[%s3 + $0x8] sm:$0xff] %vm164, %v155
  %167 = vst.msk [vmem:[%s3 + $0x10] sm:$0xff] %vm164, %v156
  %168 = vst.msk [vmem:[%s3 + $0x18] sm:$0xff] %vm164, %v157
  %169 = vst.msk [vmem:[%s3 + $0x20] sm:$0xff] %vm164, %v158
  %170 = vst.msk [vmem:[%s3 + $0x28] sm:$0xff] %vm164, %v159
  %171 = vst.msk [vmem:[%s3 + $0x30] sm:$0xff] %vm164, %v160
  %172 = vst.msk [vmem:[%s3 + $0x38] sm:$0xff] %vm164, %v161
  %173 = vst.msk [vmem:[%s3 + $0x40] sm:$0xff] %vm164, %v162
  %174 = vst.msk [vmem:[%s3 + $0x48] sm:$0xff] %vm164, %v163
  // Predicated region
  $region14: #{tpu_custom_call.1} parent=0 // pred_check
    _
  $region15: #{tpu_custom_call.1} parent=0 // pred_check_branch
    %176 = sbr.rel (0) target = $region17
  $region16: #{tpu_custom_call.1} parent=0 // pred_region
    _
  $region17: #{tpu_custom_call.1} parent=0 // pred_fallthru
    _
  // Predicated region
  $region18: #{tpu_custom_call.1} parent=0 // pred_check
    _
  $region19: #{tpu_custom_call.1} parent=0 // pred_check_branch
    %178 = sbr.rel (0) target = $region21
  $region20: #{tpu_custom_call.1} parent=0 // pred_region
    _
  $region21: #{tpu_custom_call.1} parent=0 // pred_fallthru
    _

</llo_original>
